<compile_context>
chip_gen: v7x
topology: tpu7x:2x2x1
jax: 0.10.0
libtpu: 0.0.40
codegen_flags: <defaults>
</compile_context>

<pallas_src>
import functools

import jax
import jax.numpy as jnp
from jax.experimental import pallas as pl
from jax.experimental.pallas import tpu as pltpu


def _classify_loss_kernel(x_ref, t_ref, o_ref, *, eps, num_classes, tile_b, batch,
                          masked):
    # x_ref: (tile_b, C) logits tile, t_ref: (tile_b, 1) int32 labels,
    # o_ref: (1, 1, 128) per-tile partial loss (lane-dense store).
    x = x_ref[...].astype(jnp.float32)                       # (tile_b, C)
    t = t_ref[...]                                           # (tile_b, 1)

    # Numerically-stable log-sum-exp over the class axis.
    m = jnp.max(x, axis=1, keepdims=True)                    # (tile_b, 1)
    lse = jnp.log(jnp.sum(jnp.exp(x - m), axis=1, keepdims=True))

    # Fused weighted reduce:
    #   row_loss = m + lse - sum_c w_c * x_c,  w_c = (1-eps)*[c==t] + eps/C,
    # valid because sum_c w_c == 1. (Out-of-range targets contribute only the
    # eps/C background term, matching one_hot/scatter semantics.)
    class_idx = jax.lax.broadcasted_iota(jnp.int32, (1, num_classes), 1)  # (1, C)
    w = jnp.where(class_idx == t,
                  1.0 - eps + eps / num_classes,
                  eps / num_classes)                          # (tile_b, C) f32
    wx = jnp.sum(w * x, axis=1, keepdims=True)                # (tile_b, 1)
    row_loss = m + lse - wx

    # Mask out-of-bounds rows of the last partial block (static check: only
    # emitted when the batch is ragged w.r.t. tile_b).
    if masked:
        row_idx = jax.lax.broadcasted_iota(jnp.int32, (tile_b, 1), 0)
        global_row = pl.program_id(0) * tile_b + row_idx
        row_loss = jnp.where(global_row < batch, row_loss, 0.0)

    partial = jnp.sum(row_loss)                               # scalar
    o_ref[...] = jnp.broadcast_to(partial, o_ref.shape)       # unmasked lane-dense store


def custom_classify_loss(inputs, targets, *, epsilon=0.1, label_smooth=True):
    """inputs: (B, C) float logits; targets: (B,) int labels. Returns scalar f32 loss."""
    B, C = inputs.shape
    eps = float(epsilon) if label_smooth else 0.0

    itemsize = jnp.dtype(inputs.dtype).itemsize
    sub = max(8, 32 // itemsize)                  # sublane tile: 8 f32 / 16 bf16 / 32 int8

    # --- generation-aware VMEM budget -----------------------------------------
    try:
        vmem_cap = int(pltpu.get_tpu_info().vmem_capacity_bytes)
    except Exception:
        vmem_cap = 64 << 20                        # conservative (v7x per-TC VMEM)
    if vmem_cap >= (128 << 20):                    # v5e / v6e
        tile_budget, vmem_limit = 8 << 20, 96 << 20
    else:                                          # v7x (or unknown)
        tile_budget, vmem_limit = 4 << 20, 48 << 20

    # --- batch tile: sized purely by bytes, (8,128)-friendly -------------------
    rows_by_bytes = max(sub, tile_budget // max(1, C * itemsize))
    b_ceil = -(-B // sub) * sub                    # batch rounded up to sublane tile
    tile_b = min(rows_by_bytes, b_ceil, 65536)
    tile_b = max(sub, (tile_b // sub) * sub)
    num_tiles = -(-B // tile_b)

    # v7x megacore: make sure both TensorCores get work when the batch allows.
    if num_tiles < 2 and B >= 2 * sub:
        tile_b = -(-((B + 1) // 2) // sub) * sub
        num_tiles = -(-B // tile_b)

    masked = (B % tile_b) != 0                     # ragged last block -> mask in kernel

    # Labels ride the same batch-tiled pipeline (tiny narrow DMA; bytes negligible).
    t = targets.astype(jnp.int32).reshape(B, 1)

    kernel = functools.partial(
        _classify_loss_kernel,
        eps=eps, num_classes=C, tile_b=tile_b, batch=B, masked=masked,
    )

    cost = pl.CostEstimate(
        flops=6 * B * C,
        transcendentals=B * C,
        bytes_accessed=B * C * itemsize + B * 4 + num_tiles * 128 * 4,
    )

    partials = pl.pallas_call(
        kernel,
        out_shape=jax.ShapeDtypeStruct((num_tiles, 1, 128), jnp.float32),
        grid=(num_tiles,),
        in_specs=[
            pl.BlockSpec((tile_b, C), lambda i: (i, 0)),   # logits tile (input dtype)
            pl.BlockSpec((tile_b, 1), lambda i: (i, 0)),   # labels tile
        ],
        out_specs=pl.BlockSpec((1, 1, 128), lambda i: (i, 0, 0)),
        compiler_params=pltpu.CompilerParams(
            dimension_semantics=("parallel",),
            vmem_limit_bytes=vmem_limit,
        ),
        cost_estimate=cost,
    )(inputs, t)

    # Final reduction + 1/B normalization done once, outside the kernel.
    return jnp.sum(partials[:, 0, 0]) / B


def _reference_loss(inputs, targets, epsilon=0.1, label_smooth=True):
    eps = epsilon if label_smooth else 0.0
    x = inputs.astype(jnp.float32)
    log_probs = jax.nn.log_softmax(x, axis=1)
    onehot = jax.nn.one_hot(targets, x.shape[1], dtype=jnp.float32)
    smoothed = (1.0 - eps) * onehot + eps / x.shape[1]
    return jnp.sum(jnp.mean(-smoothed * log_probs, axis=0))


if __name__ == "__main__":
    key = jax.random.PRNGKey(0)
    k1, k2, k3, k4, k5, k6, k7, k8 = jax.random.split(key, 8)

    # Small shape consistent with the module: (batch, num_classes) logits + labels.
    batch, num_classes = 8, 32
    inputs = jax.random.normal(k1, (batch, num_classes), dtype=jnp.float32)
    targets = jax.random.randint(k2, (batch,), 0, num_classes, dtype=jnp.int32)
    loss = custom_classify_loss(inputs, targets, epsilon=0.1, label_smooth=True)
    jax.block_until_ready(loss)
    ref = _reference_loss(inputs, targets, epsilon=0.1, label_smooth=True)
    assert jnp.allclose(loss, ref, atol=1e-5, rtol=1e-5), (loss, ref)

    # Ragged batch (no HBM pad anymore): exercises the partial-last-block + mask path.
    b2, c2 = 13, 40
    inputs2 = jax.random.normal(k3, (b2, c2), dtype=jnp.float32)
    targets2 = jax.random.randint(k4, (b2,), 0, c2, dtype=jnp.int32)
    loss2 = custom_classify_loss(inputs2, targets2, epsilon=0.1, label_smooth=True)
    jax.block_until_ready(loss2)
    ref2 = _reference_loss(inputs2, targets2, epsilon=0.1, label_smooth=True)
    assert jnp.allclose(loss2, ref2, atol=1e-5, rtol=1e-5), (loss2, ref2)

    # Multi-tile grid (>=2 steps) + masked tail, and the label_smooth=False path.
    b3, c3 = 40, 24
    inputs3 = jax.random.normal(k5, (b3, c3), dtype=jnp.float32)
    targets3 = jax.random.randint(k6, (b3,), 0, c3, dtype=jnp.int32)
    loss3 = custom_classify_loss(inputs3, targets3, epsilon=0.1, label_smooth=False)
    jax.block_until_ready(loss3)
    ref3 = _reference_loss(inputs3, targets3, epsilon=0.1, label_smooth=False)
    assert jnp.allclose(loss3, ref3, atol=1e-5, rtol=1e-5), (loss3, ref3)

    # bf16 logits stay bf16 in HBM; the f32 cast happens per-tile inside the kernel.
    b4, c4 = 24, 48
    inputs4 = jax.random.normal(k7, (b4, c4), dtype=jnp.bfloat16)
    targets4 = jax.random.randint(k8, (b4,), 0, c4, dtype=jnp.int32)
    loss4 = custom_classify_loss(inputs4, targets4, epsilon=0.1, label_smooth=True)
    jax.block_until_ready(loss4)
    ref4 = _reference_loss(inputs4, targets4, epsilon=0.1, label_smooth=True)
    assert jnp.allclose(loss4, ref4, atol=1e-4, rtol=1e-4), (loss4, ref4)

    print("KERNEL_OK")
</pallas_src>

<mosaic_0001>
module attributes {stable_mosaic.version = 11 : i64} {
  func.func @_classify_loss_kernel(%arg0: i32, %arg1: memref<8x32xf32, #tpu.memory_space<vmem>>, %arg2: memref<8x1xi32, #tpu.memory_space<vmem>>, %arg3: memref<1x1x128xf32, #tpu.memory_space<vmem>>) attributes {dimension_semantics = [#tpu.dimension_semantics<parallel>], iteration_bounds = array<i64: 1>, scalar_prefetch = 0 : i64, scratch_operands = 0 : i64, tpu.core_type = #tpu.core_type<tc>, window_params = [{transform_indices = @transform_0, window_bounds = array<i64: 8, 32>}, {transform_indices = @transform_1, window_bounds = array<i64: 8, 1>}, {transform_indices = @transform_2, window_bounds = array<i64: 1, 1, 128>}]} {
    %c0 = arith.constant 0 : index
    %c0_0 = arith.constant 0 : index
    %0 = vector.load %arg1[%c0, %c0_0] : memref<8x32xf32, #tpu.memory_space<vmem>>, vector<8x32xf32>
    %c0_1 = arith.constant 0 : index
    %c0_2 = arith.constant 0 : index
    %1 = vector.load %arg2[%c0_1, %c0_2] : memref<8x1xi32, #tpu.memory_space<vmem>>, vector<8x1xi32>
    %cst = arith.constant dense<0xFF800000> : vector<8xf32>
    %2 = vector.multi_reduction <maximumf>, %0, %cst [1] : vector<8x32xf32> to vector<8xf32>
    %3 = vector.shape_cast %2 : vector<8xf32> to vector<8x1xf32>
    %4 = vector.broadcast %3 : vector<8x1xf32> to vector<8x32xf32>
    %5 = arith.subf %0, %4 : vector<8x32xf32>
    %6 = math.exp %5 : vector<8x32xf32>
    %cst_3 = arith.constant dense<0.000000e+00> : vector<8xf32>
    %7 = vector.multi_reduction <add>, %6, %cst_3 [1] : vector<8x32xf32> to vector<8xf32>
    %8 = vector.shape_cast %7 : vector<8xf32> to vector<8x1xf32>
    %9 = math.log %8 : vector<8x1xf32>
    %10 = tpu.iota {dimensions = array<i32: 1>} : vector<1x32xi32>
    %11 = vector.broadcast %10 : vector<1x32xi32> to vector<8x32xi32>
    %12 = vector.broadcast %1 : vector<8x1xi32> to vector<8x32xi32>
    %13 = arith.cmpi eq, %11, %12 : vector<8x32xi32>
    %cst_4 = arith.constant 0.903124988 : f32
    %cst_5 = arith.constant 3.125000e-03 : f32
    %14 = vector.broadcast %cst_4 : f32 to vector<8x32xf32>
    %15 = vector.broadcast %cst_5 : f32 to vector<8x32xf32>
    %16 = arith.select %13, %14, %15 : vector<8x32xi1>, vector<8x32xf32>
    %17 = arith.mulf %16, %0 : vector<8x32xf32>
    %cst_6 = arith.constant dense<0.000000e+00> : vector<8xf32>
    %18 = vector.multi_reduction <add>, %17, %cst_6 [1] : vector<8x32xf32> to vector<8xf32>
    %19 = vector.shape_cast %18 : vector<8xf32> to vector<8x1xf32>
    %20 = arith.addf %3, %9 : vector<8x1xf32>
    %21 = arith.subf %20, %19 : vector<8x1xf32>
    %22 = vector.shape_cast %21 : vector<8x1xf32> to vector<1x8x1xf32>
    %cst_7 = arith.constant dense<0.000000e+00> : vector<1xf32>
    %23 = vector.multi_reduction <add>, %22, %cst_7 [1, 2] : vector<1x8x1xf32> to vector<1xf32>
    %24 = vector.shape_cast %23 : vector<1xf32> to vector<1x1x1xf32>
    %25 = vector.extract %24[0, 0, 0] : f32 from vector<1x1x1xf32>
    %26 = vector.broadcast %25 : f32 to vector<1x1x128xf32>
    %c0_8 = arith.constant 0 : index
    %c0_9 = arith.constant 0 : index
    %c0_10 = arith.constant 0 : index
    %27 = vector.load %arg3[%c0_8, %c0_9, %c0_10] : memref<1x1x128xf32, #tpu.memory_space<vmem>>, vector<1x1x128xf32>
    tpu.vector_store %arg3[%c0_8, %c0_9, %c0_10], %26 {strides = array<i32>} : memref<1x1x128xf32, #tpu.memory_space<vmem>>, vector<1x1x128xf32>,
    return
  }
  func.func @transform_0(%arg0: i32) -> (i32, i32) {
    %c0_i32 = arith.constant 0 : i32
    %c0_i32_0 = arith.constant 0 : i32
    return %arg0, %c0_i32 : i32, i32
  }
  func.func @transform_1(%arg0: i32) -> (i32, i32) {
    %c0_i32 = arith.constant 0 : i32
    %c0_i32_0 = arith.constant 0 : i32
    return %arg0, %c0_i32 : i32, i32
  }
  func.func @transform_2(%arg0: i32) -> (i32, i32, i32) {
    %c0_i32 = arith.constant 0 : i32
    %c0_i32_0 = arith.constant 0 : i32
    %c0_i32_1 = arith.constant 0 : i32
    return %arg0, %c0_i32, %c0_i32_0 : i32, i32, i32
  }
}

</mosaic_0001>

<llo_original>
// kernel: tpu_custom_call.1
$region0: #{tpu_custom_call.1}
  #allocation0 [shape = 'u32[]', space=smem, size = 0x4, offset = 0x4, fixed_abs, tag = 'smem constant byte address 0x4 - core index']
  #allocation1 [shape = 'u32[144,128]{1,0:T(1,128)}', space=vmem, size = 0x12000, scoped, tag = 'internal scratch']
  %s0 = inlined_call_operand.vmem [shape: f32[8,32], index: 0, kind: input, shape index: {}]
  %s1 = inlined_call_operand.vmem [shape: s32[8,1], index: 1, kind: input, shape index: {}]
  %s2 = inlined_call_operand.hbm [shape: f32[1,1,128], index: 2, kind: output, shape index: {}]
  %s3 = sld [smem:[#allocation0]]
  $region18: #{tpu_custom_call.1} parent=0
    _
  %s5 = ssub.s32 1, %s3
  %s6 = scalar_select 0, %s5, %s3
  $region1: #{tpu_custom_call.1} parent=0
    #allocation2 [shape = 'u8[512]{0}', space=vmem, size = 0x400, scoped, tag = 'output window, operand 0, single buffered']
    #allocation3 [shape = 's32[1]{0}', space=sflag, size = 0x4, scoped, tag = 'scoped memory for tpu_custom_call.1']
    %7 = vsyncpa [#allocation3], 0
    // Predicated region
    $region2: #{tpu_custom_call.1} parent=1 // pred_check
      _
    $region3: #{tpu_custom_call.1} parent=1 // pred_check_branch
      %9 = sbr.rel (0) target = $region5
    $region4: #{tpu_custom_call.1} parent=1 // pred_region
      _
    $region5: #{tpu_custom_call.1} parent=1 // pred_fallthru
      _
    // Predicated region
    $region6: #{tpu_custom_call.1} parent=1 // pred_check
      _
    $region7: #{tpu_custom_call.1} parent=1 // pred_check_branch
      %11 = sbr.rel (0) target = $region9
    $region8: #{tpu_custom_call.1} parent=1 // pred_region
      _
    $region9: #{tpu_custom_call.1} parent=1 // pred_fallthru
      _
    %v12 = vld [vmem:[%s0] sm:$0xff]
    %v13 = vld [vmem:[%s1] sm:$0xff]
    %vm14 = vcmask 261120
    %v15 = vsel %vm14, %v12, -inf
    %16 = vmax.xlane.f32.xlu0 %v15
    %v17 = vpop.xlane.xlu0 %16
    %v18 = vsub.f32 %v12, %v17
    %v19 = vmul.f32 %v18, 1.442695
    %v20 = vpow.pop %v19
    %v21 = vsel %vm14, %v20, 0.0
    %22 = vadd.xlane.f32.xlu0 %v21
    %v23 = vpop.xlane.xlu0 %22
    %v24 = vlog2.pop %v23
    %v25 = vmul.f32 %v24, 0.6931472
    %v26 = vlaneseq
    %v27 = vand.u32 %v26, 127
    %28 = vset.pattern.permute.xlu0 0
    %29 = vperm.xlu0 %28, %v13
    %v30 = vpop.permute.xlu0 %29
    %vm31 = vcmp.eq.s32.totalorder %v27, %v30
    %v32 = vsel %vm31, 0.903125, 0.003125
    %v33 = vmul.f32 %v32, %v12
    %v34 = vsel %vm14, %v33, 0.0
    %35 = vadd.xlane.f32.xlu0 %v34
    %v36 = vpop.xlane.xlu0 %35
    %v37 = vadd.f32 %v17, %v25
    %v38 = vsub.f32 %v37, %v36
    %vm39 = vcmask 7168
    %v40 = vsel %vm39, %v38, 0.0
    %41 = vadd.xlane.f32.xlu0 %v40
    %v42 = vpop.xlane.xlu0 %41
    %v43 = vrot.slane %v42, 4
    %v44 = vadd.f32 %v42, %v43
    %v45 = vrot.slane %v44, 2
    %v46 = vadd.f32 %v44, %v45
    %v47 = vrot.slane %v46, 1
    %v48 = vadd.f32 %v46, %v47
    %s49 = vtos %v48
    %v50 = vstv %s49
    %51 = vst [vmem:[#allocation2] sm:$0x1] %v50
    // Predicated region
    $region10: #{tpu_custom_call.1} parent=1 // pred_check
      _
    $region11: #{tpu_custom_call.1} parent=1 // pred_check_branch
      %53 = sbr.rel (0) target = $region13
    $region12: #{tpu_custom_call.1} parent=1 // pred_region
      %s55 = ssub.s32 16, 16
      %56 = vsyncadd [#allocation3], %s55
      %s58 = sshll.u32 [#allocation2], 4
      %s59 = int_to_ptr.vmem [resolvable:$true] %s58
      %61 = dma.vmem_to_hbm [thread:$0]  %s59, 16, %s2, [#allocation3]
    $region13: #{tpu_custom_call.1} parent=1 // pred_fallthru
      _
    // Predicated region
    $region14: #{tpu_custom_call.1} parent=1 // pred_check
      _
    $region15: #{tpu_custom_call.1} parent=1 // pred_check_branch
      %63 = sbr.rel (0) target = $region17
    $region16: #{tpu_custom_call.1} parent=1 // pred_region
      %64 = dma.done [#allocation3], 16
    $region17: #{tpu_custom_call.1} parent=1 // pred_fallthru
      _
    %65 = vsyncpa [#allocation3], 1

</llo_original>
